<compile_context>
chip_gen: v6e
topology: v6e:2x2x1
jax: 0.10.0
libtpu: 0.0.40
codegen_flags: <defaults>
</compile_context>

<pallas_src>
import math

import jax
import jax.numpy as jnp
from jax.experimental import pallas as pl
from jax.experimental.pallas import tpu as pltpu


def _round_up(a, b):
    return ((a + b - 1) // b) * b


# ---------------------------------------------------------------------------
# Pallas kernel: one fused lane-dense matmul for both heads.
#   x_ref:   (TILE_N, TILE_K)      activation slab
#   w_ref:   (TILE_K, OUT_PAD)     fused [cls | bbox] weight slab
#   b_ref:   (1, OUT_PAD)          fused bias (zero in padded columns), f32
#   out_ref: (TILE_N, OUT_PAD) f32 fused output block (lane-dense, mult of 128)
# Grid = (N tiles [parallel], K tiles [arbitrary/reduction over D]).
# The output block is revisited across the K axis and serves as the f32
# accumulator; it is initialized with the broadcast bias at k == 0.
# ---------------------------------------------------------------------------
def _fused_heads_kernel(x_ref, w_ref, b_ref, out_ref):
    k = pl.program_id(1)

    @pl.when(k == 0)
    def _():
        out_ref[...] = jnp.broadcast_to(b_ref[...], out_ref.shape)

    out_ref[...] += jnp.dot(x_ref[...], w_ref[...],
                            preferred_element_type=jnp.float32)


# ---------------------------------------------------------------------------
# One-time parameter preparation (hoisted out of the forward path):
# transpose, fuse, and pad both heads.
# ---------------------------------------------------------------------------
def prepare_fused_params(w_cls, b_cls, w_bbox, b_bbox, *,
                         compute_dtype=jnp.float32, tile_k_max=512):
    """Returns (w_fused, b_fused, meta).

      w_fused: (D_PAD, OUT_PAD) = [W_cls.T | W_bbox.T], zero padded.
      b_fused: (1, OUT_PAD)     = [b_cls | b_bbox | 0...], f32.

    compute_dtype may be set to jnp.bfloat16 on v6e/v7x for full-rate MXU and
    half the weight/activation bytes; accumulation and bias stay f32.
    """
    c_out, d = w_cls.shape
    r_out = w_bbox.shape[0]
    out = c_out + r_out
    out_pad = _round_up(out, 128)          # lane-dense output (unmasked vst)

    if d <= tile_k_max:                    # whole contraction in one slab
        tile_k = max(d, 1)
        d_pad = d
    else:                                  # tile the reduction axis
        tile_k = tile_k_max
        d_pad = _round_up(d, tile_k)

    w = jnp.concatenate(
        [jnp.asarray(w_cls, compute_dtype).T,
         jnp.asarray(w_bbox, compute_dtype).T], axis=1)           # (D, out)
    w = jnp.pad(w, ((0, d_pad - d), (0, out_pad - out)))          # (D_PAD, OUT_PAD)

    b = jnp.concatenate(
        [jnp.asarray(b_cls, jnp.float32), jnp.asarray(b_bbox, jnp.float32)])
    b = jnp.pad(b, (0, out_pad - out)).reshape(1, out_pad)        # (1, OUT_PAD)

    meta = dict(d=d, d_pad=d_pad, tile_k=tile_k,
                c_out=c_out, r_out=r_out, out_pad=out_pad,
                compute_dtype=compute_dtype)
    return w, b, meta


# ---------------------------------------------------------------------------
# Forward pass (uses pre-fused params).
# ---------------------------------------------------------------------------
def fastrcnn_output_layers(x, w_fused, b_fused, meta, *, tile_n_max=256):
    """BoxUncertaintyFastRCNNOutputLayers.forward.

    Args:
      x: (N, C, H, W) or (N, D) activations.
    Returns:
      scores:          (N, num_classes + 1)            float32
      proposal_deltas: (N, r_out // 2, 2)              float32
    """
    if x.ndim > 2:
        x = x.reshape(x.shape[0], -1)      # torch.flatten(x, start_dim=1)

    n, d = x.shape
    assert d == meta["d"], "activation feature size mismatch"
    compute_dtype = meta["compute_dtype"]
    d_pad, tile_k = meta["d_pad"], meta["tile_k"]
    out_pad, c_out, r_out = meta["out_pad"], meta["c_out"], meta["r_out"]

    x = x.astype(compute_dtype)

    # N tile: up to 256 keeps the 256-wide MXU (v6e/v7x) full; pass
    # tile_n_max=128 on v5e.  Small batches use the full (8-rounded) N so we
    # don't over-pad.
    tile_n = min(tile_n_max, _round_up(n, 8))
    n_pad = _round_up(n, tile_n)
    if n_pad != n or d_pad != d:
        x = jnp.pad(x, ((0, n_pad - n), (0, d_pad - d)))

    grid = (n_pad // tile_n, d_pad // tile_k)

    # Conservative VMEM budget: double-buffered blocks, floored at 32 MiB and
    # capped at 64 MiB so the same plan fits v7x.
    in_bytes = jnp.dtype(compute_dtype).itemsize
    est = 2 * (tile_n * tile_k * in_bytes            # x block
               + tile_k * out_pad * in_bytes         # weight block
               + out_pad * 4                         # bias block
               + tile_n * out_pad * 4)               # output/accumulator block
    vmem_limit = int(min(max(2 * est + (4 << 20), 32 << 20), 64 << 20))

    fused = pl.pallas_call(
        _fused_heads_kernel,
        out_shape=jax.ShapeDtypeStruct((n_pad, out_pad), jnp.float32),
        grid_spec=pltpu.PrefetchScalarGridSpec(
            num_scalar_prefetch=0,
            grid=grid,
            in_specs=[
                pl.BlockSpec((tile_n, tile_k), lambda i, k: (i, k)),
                pl.BlockSpec((tile_k, out_pad), lambda i, k: (k, 0)),
                pl.BlockSpec((1, out_pad), lambda i, k: (0, 0)),
            ],
            out_specs=pl.BlockSpec((tile_n, out_pad), lambda i, k: (i, 0)),
        ),
        compiler_params=pltpu.CompilerParams(
            dimension_semantics=("parallel", "arbitrary"),
            vmem_limit_bytes=vmem_limit,
        ),
    )(x, w_fused, b_fused)

    # Slice the padded fused output back into the two heads.
    scores = fused[:n, :c_out]
    proposal_deltas = fused[:n, c_out:c_out + r_out].reshape(n, -1, 2)
    return scores, proposal_deltas


# ---------------------------------------------------------------------------
# Deterministic parameter initialization (mirrors the module's __init__)
# ---------------------------------------------------------------------------
def init_params(key, input_size, num_classes, cls_agnostic_bbox_reg,
                box_dim=4, loss_type="focal"):
    k_cls, k_bbox = jax.random.split(key)
    num_bbox_reg_classes = (1 if cls_agnostic_bbox_reg else num_classes) * 2

    # nn.init.normal_(cls_score.weight, std=0.01)
    w_cls = 0.01 * jax.random.normal(k_cls, (num_classes + 1, input_size),
                                     dtype=jnp.float32)
    # nn.init.normal_(bbox_pred.weight, std=0.001)
    w_bbox = 0.001 * jax.random.normal(
        k_bbox, (num_bbox_reg_classes * box_dim, input_size), dtype=jnp.float32)

    b_cls = jnp.zeros((num_classes + 1,), jnp.float32)
    b_bbox = jnp.zeros((num_bbox_reg_classes * box_dim,), jnp.float32)

    if loss_type == "focal" and num_classes > 0:
        prior_prob = 1.0 / num_classes
        bias_value = -math.log((1.0 - prior_prob) / prior_prob)
        b_cls = jnp.full((num_classes + 1,), bias_value, jnp.float32)

    return w_cls, b_cls, w_bbox, b_bbox


if __name__ == "__main__":
    # Small, deterministic example consistent with the module's forward:
    # x is a per-ROI feature map (N proposals, C channels, H, W).
    # D = 1024 so the K (reduction) grid axis has 2 tiles and the
    # accumulate-into-output path is exercised.
    N, C, H, W = 16, 16, 8, 8          # D = 1024
    num_classes = 8
    cls_agnostic_bbox_reg = False
    box_dim = 4
    D = C * H * W

    key = jax.random.PRNGKey(0)
    kx, kp = jax.random.split(key)

    x = jax.random.normal(kx, (N, C, H, W), dtype=jnp.float32)
    w_cls, b_cls, w_bbox, b_bbox = init_params(
        kp, D, num_classes, cls_agnostic_bbox_reg, box_dim, loss_type="focal")

    # One-time fuse/transpose/pad of the two heads (hoisted out of forward).
    w_fused, b_fused, meta = prepare_fused_params(w_cls, b_cls, w_bbox, b_bbox)

    fwd = jax.jit(lambda xx: fastrcnn_output_layers(xx, w_fused, b_fused, meta))
    scores, proposal_deltas = fwd(x)
    jax.block_until_ready((scores, proposal_deltas))

    # Reference check in plain JAX (same math, highest precision).
    x_flat = x.reshape(N, -1)
    scores_ref = jnp.dot(x_flat, w_cls.T,
                         precision=jax.lax.Precision.HIGHEST) + b_cls
    deltas_ref = (jnp.dot(x_flat, w_bbox.T,
                          precision=jax.lax.Precision.HIGHEST)
                  + b_bbox).reshape(N, -1, 2)

    assert scores.shape == scores_ref.shape
    assert proposal_deltas.shape == deltas_ref.shape
    assert jnp.allclose(scores, scores_ref, atol=2e-3, rtol=1e-3)
    assert jnp.allclose(proposal_deltas, deltas_ref, atol=2e-3, rtol=1e-3)

    print("KERNEL_OK")
</pallas_src>

<mosaic_0001>
module attributes {stable_mosaic.version = 11 : i64} {
  func.func @_fused_heads_kernel(%arg0: i32, %arg1: i32, %arg2: memref<16x512xf32, #tpu.memory_space<vmem>>, %arg3: memref<512x128xf32, #tpu.memory_space<vmem>>, %arg4: memref<1x128xf32, #tpu.memory_space<vmem>>, %arg5: memref<16x128xf32, #tpu.memory_space<vmem>>) attributes {dimension_semantics = [#tpu.dimension_semantics<parallel>, #tpu.dimension_semantics<arbitrary>], iteration_bounds = array<i64: 1, 2>, scalar_prefetch = 0 : i64, scratch_operands = 0 : i64, tpu.core_type = #tpu.core_type<tc>, window_params = [{transform_indices = @transform_0, window_bounds = array<i64: 16, 512>}, {transform_indices = @transform_1, window_bounds = array<i64: 512, 128>}, {pipeline_mode = #tpu.pipeline_mode<synchronous>, transform_indices = @transform_2, window_bounds = array<i64: 1, 128>}, {transform_indices = @transform_3, window_bounds = array<i64: 16, 128>}]} {
    %c0_i32 = arith.constant 0 : i32
    %0 = arith.cmpi eq, %arg1, %c0_i32 : i32
    %1 = arith.extui %0 : i1 to i32
    %c0_i32_0 = arith.constant 0 : i32
    %2 = arith.cmpi ne, %1, %c0_i32_0 : i32
    scf.if %2 {
      %c0_8 = arith.constant 0 : index
      %c0_9 = arith.constant 0 : index
      %9 = vector.load %arg4[%c0_8, %c0_9] : memref<1x128xf32, #tpu.memory_space<vmem>>, vector<1x128xf32>
      %10 = vector.shape_cast %9 : vector<1x128xf32> to vector<1x128xf32>
      %11 = vector.broadcast %10 : vector<1x128xf32> to vector<16x128xf32>
      %c0_10 = arith.constant 0 : index
      %c0_11 = arith.constant 0 : index
      %12 = vector.load %arg5[%c0_10, %c0_11] : memref<16x128xf32, #tpu.memory_space<vmem>>, vector<16x128xf32>
      tpu.vector_store %arg5[%c0_10, %c0_11], %11 {strides = array<i32>} : memref<16x128xf32, #tpu.memory_space<vmem>>, vector<16x128xf32>,
    } else {
    }
    %c0 = arith.constant 0 : index
    %c0_1 = arith.constant 0 : index
    %3 = vector.load %arg5[%c0, %c0_1] : memref<16x128xf32, #tpu.memory_space<vmem>>, vector<16x128xf32>
    %c0_2 = arith.constant 0 : index
    %c0_3 = arith.constant 0 : index
    %4 = vector.load %arg2[%c0_2, %c0_3] : memref<16x512xf32, #tpu.memory_space<vmem>>, vector<16x512xf32>
    %c0_4 = arith.constant 0 : index
    %c0_5 = arith.constant 0 : index
    %5 = vector.load %arg3[%c0_4, %c0_5] : memref<512x128xf32, #tpu.memory_space<vmem>>, vector<512x128xf32>
    %cst = arith.constant dense<0.000000e+00> : vector<16x128xf32>
    %6 = tpu.matmul %4, %5, %cst {dimension_numbers = #tpu.dot_dimension_numbers<[1], [0], [0], [1], [0, 0, 1, 1], [], []>} : vector<16x512xf32>, vector<512x128xf32>, vector<16x128xf32> -> vector<16x128xf32>
    %7 = arith.addf %3, %6 : vector<16x128xf32>
    %c0_6 = arith.constant 0 : index
    %c0_7 = arith.constant 0 : index
    %8 = vector.load %arg5[%c0_6, %c0_7] : memref<16x128xf32, #tpu.memory_space<vmem>>, vector<16x128xf32>
    tpu.vector_store %arg5[%c0_6, %c0_7], %7 {strides = array<i32>} : memref<16x128xf32, #tpu.memory_space<vmem>>, vector<16x128xf32>,
    return
  }
  func.func @transform_0(%arg0: i32, %arg1: i32) -> (i32, i32) {
    %c0_i32 = arith.constant 0 : i32
    return %arg0, %arg1 : i32, i32
  }
  func.func @transform_1(%arg0: i32, %arg1: i32) -> (i32, i32) {
    %c0_i32 = arith.constant 0 : i32
    %c0_i32_0 = arith.constant 0 : i32
    return %arg1, %c0_i32 : i32, i32
  }
  func.func @transform_2(%arg0: i32, %arg1: i32) -> (i32, i32) {
    %c0_i32 = arith.constant 0 : i32
    %c0_i32_0 = arith.constant 0 : i32
    %c0_i32_1 = arith.constant 0 : i32
    return %c0_i32, %c0_i32_0 : i32, i32
  }
  func.func @transform_3(%arg0: i32, %arg1: i32) -> (i32, i32) {
    %c0_i32 = arith.constant 0 : i32
    %c0_i32_0 = arith.constant 0 : i32
    return %arg0, %c0_i32 : i32, i32
  }
}

</mosaic_0001>

<llo_original>
// kernel: _lambda_.1
$region0: #{_lambda_.1}
  #allocation0 [shape = 'u32[]', space=smem, size = 0x4, offset = 0x4, fixed_abs, tag = 'smem constant byte address 0x4 - core index']
  #allocation1 [shape = 'u32[144,128]{1,0:T(1,128)}', space=vmem, size = 0x12000, scoped, tag = 'internal scratch']
  %s0 = inlined_call_operand.vmem [shape: f32[16,1024], index: 0, kind: input, shape index: {}]
  %s1 = inlined_call_operand.vmem [shape: f32[1024,128], index: 1, kind: input, shape index: {}]
  %s2 = inlined_call_operand.vmem [shape: f32[1,128], index: 2, kind: input, shape index: {}]
  %s3 = inlined_call_operand.vmem [shape: f32[16,128], index: 3, kind: output, shape index: {}]
  %s4 = sld [smem:[#allocation0]]
  $region72: #{_lambda_.1} parent=0
    _
  %s6 = ssub.s32 1, %s4
  %s7 = scalar_select 0, %s6, %s4
  $region1: #{_lambda_.1} parent=0
    #allocation2 [shape = 'u8[65536]{0}', space=vmem, size = 0x10000, scoped, tag = 'input window, operand 0']
    loop: start=0, step=1, limit=4
    $region2: #{_lambda_.1} parent=1 // loop_pre_header
      _
    $region3: #{_lambda_.1} parent=1 // loop_header
      %s9 = sphi 0, %s13
      %p10 = scmp.ge.s32.totalorder %s9, 4
      %s16 = sphi 0, %s28
      %s17 = sphi 0, %s24
      %s18 = sphi 0, %s16
      %s19 = sphi 0, %s17
      %s20 = sphi 0, %s18
      %s21 = sphi 0, %s19
      %s33 = sphi 0, %s35
      %s36 = sphi 0, %s33
      %s37 = sphi 0, %s36
      %s53 = sphi 0, %s37
      %s59 = sphi 0, %s61
      %s62 = sphi 0, %s59
      %s63 = sphi 0, %s62
      %s79 = sphi 0, %s63
      %s83 = sphi 0, %s83
      %s85 = sphi 0, %s83
      %s86 = sphi 0, %s85
      %s100 = sphi 0, %s86
      %s106 = sphi 0, %s108
      %s109 = sphi 0, %s106
      %s110 = sphi 0, %s109
      %s126 = sphi 0, %s110
    $region4: #{_lambda_.1} parent=1 // loop_header_branch
      %12 = sbr.rel (%p10) target = $region8
    $region5: #{_lambda_.1} parent=1 // loop_body
      %s14 = ssub.s32 %s9, 1
      %s15 = ssub.s32 %s9, 2
      %s22 = sadd.s32 1, %s17
      %p23 = scmp.ge.s32.totalorder %s22, 2
      %s24 = scalar_select %p23, 0, %s22
      %s25 = sadd.s32 1, %s16
      %s26 = scalar_select %p23, %s25, %s16
      %p27 = scmp.ge.s32.totalorder %s26, 1
      %s28 = scalar_select %p27, 0, %s26
      %s29 = ssub.s32 %s16, %s28
      %s30 = ssub.s32 %s17, %s24
      %s31 = sor.u32 %s29, %s30
      %p32 = scmp.eq.s32.totalorder %s31, 0
      %s34 = sadd.s32 %s33, 1
      %s35 = scalar_select %p32, %s33, %s34
      %p38 = pneg %p32
      %p39 = scmp.eq.s32.totalorder %s9, 1
      %p40 = por %p38, %p39
      %p41 = scmp.ne.s32.totalorder %s33, %s36
      %p42 = scmp.eq.s32.totalorder %s9, 0
      %p43 = por %p41, %p42
      %p44 = scmp.ne.s32.totalorder %s33, %s36
      %p45 = scmp.eq.s32.totalorder %s14, 1
      %p46 = por %p44, %p45
      %p47 = scmp.ne.s32.totalorder %s36, %s37
      %p48 = scmp.eq.s32.totalorder %s14, 0
      %p49 = por %p47, %p48
      %p50 = scmp.ne.s32.totalorder %s36, %s37
      %p51 = scmp.eq.s32.totalorder %s15, 1
      %p52 = por %p50, %p51
      %p54 = scmp.ne.s32.totalorder %s37, %s53
      %p55 = scmp.eq.s32.totalorder %s15, 0
      %p56 = por %p54, %p55
      %s57 = ssub.s32 %s17, %s24
      %p58 = scmp.eq.s32.totalorder %s57, 0
      %s60 = sadd.s32 %s59, 1
      %s61 = scalar_select %p58, %s59, %s60
      %p64 = pneg %p58
      %p65 = scmp.eq.s32.totalorder %s9, 1
      %p66 = por %p64, %p65
      %p67 = scmp.ne.s32.totalorder %s59, %s62
      %p68 = scmp.eq.s32.totalorder %s9, 0
      %p69 = por %p67, %p68
      %p70 = scmp.ne.s32.totalorder %s59, %s62
      %p71 = scmp.eq.s32.totalorder %s14, 1
      %p72 = por %p70, %p71
      %p73 = scmp.ne.s32.totalorder %s62, %s63
      %p74 = scmp.eq.s32.totalorder %s14, 0
      %p75 = por %p73, %p74
      %p76 = scmp.ne.s32.totalorder %s62, %s63
      %p77 = scmp.eq.s32.totalorder %s15, 1
      %p78 = por %p76, %p77
      %p80 = scmp.ne.s32.totalorder %s63, %s79
      %p81 = scmp.eq.s32.totalorder %s15, 0
      %p82 = por %p80, %p81
      %s84 = sadd.s32 %s83, 1
      %p87 = scmp.eq.s32.totalorder %s9, 1
      %p88 = scmp.ne.s32.totalorder %s83, %s85
      %p89 = scmp.eq.s32.totalorder %s9, 0
      %p90 = por %p88, %p89
      %p91 = scmp.ne.s32.totalorder %s83, %s85
      %p92 = scmp.eq.s32.totalorder %s14, 1
      %p93 = por %p91, %p92
      %p94 = scmp.ne.s32.totalorder %s85, %s86
      %p95 = scmp.eq.s32.totalorder %s14, 0
      %p96 = por %p94, %p95
      %p97 = scmp.ne.s32.totalorder %s85, %s86
      %p98 = scmp.eq.s32.totalorder %s15, 1
      %p99 = por %p97, %p98
      %p101 = scmp.ne.s32.totalorder %s86, %s100
      %p102 = scmp.eq.s32.totalorder %s15, 0
      %p103 = por %p101, %p102
      %s104 = ssub.s32 %s16, %s28
      %p105 = scmp.eq.s32.totalorder %s104, 0
      %s107 = sadd.s32 %s106, 1
      %s108 = scalar_select %p105, %s106, %s107
      %p111 = pneg %p105
      %p112 = scmp.eq.s32.totalorder %s9, 1
      %p113 = por %p111, %p112
      %p114 = scmp.ne.s32.totalorder %s106, %s109
      %p115 = scmp.eq.s32.totalorder %s9, 0
      %p116 = por %p114, %p115
      %p117 = scmp.ne.s32.totalorder %s106, %s109
      %p118 = scmp.eq.s32.totalorder %s14, 1
      %p119 = por %p117, %p118
      %p120 = scmp.ne.s32.totalorder %s109, %s110
      %p121 = scmp.eq.s32.totalorder %s14, 0
      %p122 = por %p120, %p121
      %p123 = scmp.ne.s32.totalorder %s109, %s110
      %p124 = scmp.eq.s32.totalorder %s15, 1
      %p125 = por %p123, %p124
      %p127 = scmp.ne.s32.totalorder %s110, %s126
      %p128 = scmp.eq.s32.totalorder %s15, 0
      %p129 = por %p127, %p128
      %p130 = scmp.le.s32.totalorder 1, %s9
      %p131 = scmp.lt.s32.totalorder %s9, 3
      %p132 = pnand %p130, %p131
      %p133 = pneg %p132
      // Predicated region
      $region9: #{_lambda_.1} parent=5 // pred_check
        _
      $region10: #{_lambda_.1} parent=5 // pred_check_branch
        %135 = sbr.rel (%p132) target = $region12
      $region11: #{_lambda_.1} parent=5 // pred_region
        %s136 = ssub.s32 %s9, 1
        // Predicated region
        $region13: #{_lambda_.1} parent=11 // pred_check
          %p137 = pneg %p96
        $region14: #{_lambda_.1} parent=11 // pred_check_branch
          %139 = sbr.rel (%p137) target = $region16
        $region15: #{_lambda_.1} parent=11 // pred_region
          _
        $region16: #{_lambda_.1} parent=11 // pred_fallthru
          _
      $region12: #{_lambda_.1} parent=5 // pred_fallthru
        _
      %p140 = scmp.lt.s32.totalorder %s9, 2
      // Predicated region
      $region17: #{_lambda_.1} parent=5 // pred_check
        %p141 = pneg %p140
      $region18: #{_lambda_.1} parent=5 // pred_check_branch
        %143 = sbr.rel (%p141) target = $region20
      $region19: #{_lambda_.1} parent=5 // pred_region
        // Predicated region
        $region21: #{_lambda_.1} parent=19 // pred_check
          %p144 = pneg %p43
        $region22: #{_lambda_.1} parent=19 // pred_check_branch
          %146 = sbr.rel (%p144) target = $region24
        $region23: #{_lambda_.1} parent=19 // pred_region
          %s147 = sand.u32 %s33, 1
          %s148 = sand.u32 %s33, 1
          %s149 = smul.addr %s148, 64
          %s150 = scalar_lea.vmem [#allocation2], %s149
          %s151 = smul.u32 2, %s16
          %s152 = smul.u32 4, %s17
          %s153 = smul.addr %s151, 8
          %s154 = sadd.s32 %s152, %s153
          %s155 = smul.addr %s154, 8
          %s156 = scalar_lea.vmem %s0, %s155
          // Predicated region
          $region25: #{_lambda_.1} parent=23 // pred_check
            _
          $region26: #{_lambda_.1} parent=23 // pred_check_branch
            %158 = sbr.rel (0) target = $region28
          $region27: #{_lambda_.1} parent=23 // pred_region
            // Predicated region
            $region29: #{_lambda_.1} parent=27 // pred_check
              _
            $region30: #{_lambda_.1} parent=27 // pred_check_branch
              %160 = sbr.rel (0) target = $region32
            $region31: #{_lambda_.1} parent=27 // pred_region
              loop: start=0, step=1, limit=1
              $region33: #{_lambda_.1} parent=31 // loop_pre_header
                _
              $region34: #{_lambda_.1} parent=31 // loop_header
                %s162 = sphi 0, %s166
                %p163 = scmp.ge.s32.totalorder %s162, 1
                %s167 = sphi %s156, %s156
                %s168 = sphi %s150, %s150
              $region35: #{_lambda_.1} parent=31 // loop_header_branch
                %165 = sbr.rel (%p163) target = $region39
              $region36: #{_lambda_.1} parent=31 // loop_body
                %v169 = vld [vmem:[%s167] sm:$0xff]
                %170 = vst [vmem:[%s168] sm:$0xff] %v169
                %v171 = vld [vmem:[%s167 + $0x8] sm:$0xff]
                %172 = vst [vmem:[%s168 + $0x8] sm:$0xff] %v171
                %v173 = vld [vmem:[%s167 + $0x10] sm:$0xff]
                %174 = vst [vmem:[%s168 + $0x10] sm:$0xff] %v173
                %v175 = vld [vmem:[%s167 + $0x18] sm:$0xff]
                %176 = vst [vmem:[%s168 + $0x18] sm:$0xff] %v175
                %v177 = vld [vmem:[%s167 + $0x40] sm:$0xff]
                %178 = vst [vmem:[%s168 + $0x20] sm:$0xff] %v177
                %v179 = vld [vmem:[%s167 + $0x48] sm:$0xff]
                %180 = vst [vmem:[%s168 + $0x28] sm:$0xff] %v179
                %v181 = vld [vmem:[%s167 + $0x50] sm:$0xff]
                %182 = vst [vmem:[%s168 + $0x30] sm:$0xff] %v181
                %v183 = vld [vmem:[%s167 + $0x58] sm:$0xff]
                %184 = vst [vmem:[%s168 + $0x38] sm:$0xff] %v183
              $region37: #{_lambda_.1} parent=31 // loop_footer
                %s166 = sadd.s32 1, %s162
              $region38: #{_lambda_.1} parent=31 // loop_footer_branch
                %161 = sbr.rel target = $region34
              $region39: #{_lambda_.1} parent=31 // loop_exit
                _
            $region32: #{_lambda_.1} parent=27 // pred_fallthru
              _
            // Predicated region
            $region40: #{_lambda_.1} parent=27 // pred_check
              _
            $region41: #{_lambda_.1} parent=27 // pred_check_branch
              %186 = sbr.rel target = $region43
            $region42: #{_lambda_.1} parent=27 // pred_region
              _
            $region43: #{_lambda_.1} parent=27 // pred_fallthru
              _
          $region28: #{_lambda_.1} parent=23 // pred_fallthru
            _
          %187 = vnop
        $region24: #{_lambda_.1} parent=19 // pred_fallthru
          _
        // Predicated region
        $region44: #{_lambda_.1} parent=19 // pred_check
          %p188 = pneg %p69
        $region45: #{_lambda_.1} parent=19 // pred_check_branch
          %190 = sbr.rel (%p188) target = $region47
        $region46: #{_lambda_.1} parent=19 // pred_region
          %s191 = smul.u32 64, %s17
          %p192 = scmp.lt.s32.totalorder %s191, 127
          %s193 = scalar_select %p192, %s191, 127
          %s194 = smul.addr %s193, 8
          %s195 = scalar_lea.vmem %s1, %s194
          %s196 = smul.u32 64, %s17
        $region47: #{_lambda_.1} parent=19 // pred_fallthru
          _
      $region20: #{_lambda_.1} parent=5 // pred_fallthru
        _
      %p197 = scmp.le.s32.totalorder 1, %s9
      %p198 = scmp.lt.s32.totalorder %s9, 3
      %p199 = pnand %p197, %p198
      %p200 = pneg %p199
      // Predicated region
      $region48: #{_lambda_.1} parent=5 // pred_check
        _
      $region49: #{_lambda_.1} parent=5 // pred_check_branch
        %202 = sbr.rel (%p199) target = $region51
      $region50: #{_lambda_.1} parent=5 // pred_region
        %s203 = ssub.s32 %s9, 1
        %s204 = sand.u32 %s36, 1
        %s205 = sand.u32 %s36, 1
        %s206 = smul.addr %s205, 64
        %s207 = scalar_lea.vmem [#allocation2], %s206
        // Predicated region
        $region52: #{_lambda_.1} parent=50 // pred_check
          %p208 = pneg %p49
        $region53: #{_lambda_.1} parent=50 // pred_check_branch
          %210 = sbr.rel (%p208) target = $region55
        $region54: #{_lambda_.1} parent=50 // pred_region
          _
        $region55: #{_lambda_.1} parent=50 // pred_fallthru
          _
        %s211 = sand.u32 %s36, 1
        %s212 = sand.u32 %s36, 1
        %s213 = smul.addr %s212, 64
        %s214 = scalar_lea.vmem [#allocation2], %s213
        %p215 = pneg %p49
        %p216 = pneg %p46
        %s217 = smul.u32 64, %s19
        %p218 = scmp.lt.s32.totalorder %s217, 127
        %s219 = scalar_select %p218, %s217, 127
        %s220 = smul.addr %s219, 8
        %s221 = scalar_lea.vmem %s1, %s220
        %p222 = pneg %p75
        %p223 = pneg %p72
        %p224 = pneg %p96
        %p225 = pneg %p93
        %p226 = pneg %p122
        %p227 = pneg %p119
        %s228 = smul.u32 2, %s18
        %p229 = scmp.lt.s32.totalorder %s228, 1
        %s230 = scalar_select %p229, %s228, 1
        %s231 = smul.addr %s230, 8
        %s232 = scalar_lea.vmem %s3, %s231
        %s233 = smul.u32 2, %s18
        %s234 = smul.u32 4, %s19
        %s235 = smul.u32 64, %s19
        %p236 = scmp.lt.s32.totalorder %s235, 127
        %s237 = scalar_select %p236, %s235, 127
        %s238 = smul.addr %s237, 8
        %s239 = scalar_lea.vmem %s1, %s238
        %s240 = smul.u32 64, %s19
        %s241 = smul.u32 2, %s18
        %p242 = scmp.lt.s32.totalorder %s241, 1
        %s243 = scalar_select %p242, %s241, 1
        %s244 = smul.addr %s243, 8
        %s245 = scalar_lea.vmem %s3, %s244
        %s246 = smul.u32 2, %s18
        %p247 = scmp.eq.s32.totalorder %s19, 0
        // Predicated region
        $region56: #{_lambda_.1} parent=50 // pred_check
          %p248 = pneg %p247
        $region57: #{_lambda_.1} parent=50 // pred_check_branch
          %250 = sbr.rel (%p248) target = $region59
        $region58: #{_lambda_.1} parent=50 // pred_region
          %v251 = vld [vmem:[%s2] sm:$0x1]
          %v253 = vlaneseq
          %v254 = vshrl.u32 %v253, 7
          %v255 = vsub.s32 0, %v254
          %v256 = vrot.slane %v251, %v255
          %258 = vst [vmem:[%s245] sm:$0xff] %v256
          %259 = vst [vmem:[%s245 + $0x8] sm:$0xff] %v256
        $region59: #{_lambda_.1} parent=50 // pred_fallthru
          _
        %v260 = vld [vmem:[%s245] sm:$0xff]
        %v261 = vld [vmem:[%s245 + $0x8] sm:$0xff]
        %v262 = vld [vmem:[%s207] sm:$0xff]
        %v263 = vld [vmem:[%s207 + $0x8] sm:$0xff]
        %v264 = vld [vmem:[%s207 + $0x10] sm:$0xff]
        %v265 = vld [vmem:[%s207 + $0x18] sm:$0xff]
        %v266 = vld [vmem:[%s207 + $0x20] sm:$0xff]
        %v267 = vld [vmem:[%s207 + $0x28] sm:$0xff]
        %v268 = vld [vmem:[%s207 + $0x30] sm:$0xff]
        %v269 = vld [vmem:[%s207 + $0x38] sm:$0xff]
        %v270 = vld [vmem:[%s239] sm:$0xff]
        %v271 = vld [vmem:[%s239 + $0x8] sm:$0xff]
        %v272 = vld [vmem:[%s239 + $0x10] sm:$0xff]
        %v273 = vld [vmem:[%s239 + $0x18] sm:$0xff]
        %v274 = vld [vmem:[%s239 + $0x20] sm:$0xff]
        %v275 = vld [vmem:[%s239 + $0x28] sm:$0xff]
        %v276 = vld [vmem:[%s239 + $0x30] sm:$0xff]
        %v277 = vld [vmem:[%s239 + $0x38] sm:$0xff]
        %v278 = vld [vmem:[%s239 + $0x40] sm:$0xff]
        %v279 = vld [vmem:[%s239 + $0x48] sm:$0xff]
        %v280 = vld [vmem:[%s239 + $0x50] sm:$0xff]
        %v281 = vld [vmem:[%s239 + $0x58] sm:$0xff]
        %v282 = vld [vmem:[%s239 + $0x60] sm:$0xff]
        %v283 = vld [vmem:[%s239 + $0x68] sm:$0xff]
        %v284 = vld [vmem:[%s239 + $0x70] sm:$0xff]
        %v285 = vld [vmem:[%s239 + $0x78] sm:$0xff]
        %v286 = vld [vmem:[%s239 + $0x80] sm:$0xff]
        %v287 = vld [vmem:[%s239 + $0x88] sm:$0xff]
        %v288 = vld [vmem:[%s239 + $0x90] sm:$0xff]
        %v289 = vld [vmem:[%s239 + $0x98] sm:$0xff]
        %v290 = vld [vmem:[%s239 + $0xa0] sm:$0xff]
        %v291 = vld [vmem:[%s239 + $0xa8] sm:$0xff]
        %v292 = vld [vmem:[%s239 + $0xb0] sm:$0xff]
        %v293 = vld [vmem:[%s239 + $0xb8] sm:$0xff]
        %v294 = vld [vmem:[%s239 + $0xc0] sm:$0xff]
        %v295 = vld [vmem:[%s239 + $0xc8] sm:$0xff]
        %v296 = vld [vmem:[%s239 + $0xd0] sm:$0xff]
        %v297 = vld [vmem:[%s239 + $0xd8] sm:$0xff]
        %v298 = vld [vmem:[%s239 + $0xe0] sm:$0xff]
        %v299 = vld [vmem:[%s239 + $0xe8] sm:$0xff]
        %v300 = vld [vmem:[%s239 + $0xf0] sm:$0xff]
        %v301 = vld [vmem:[%s239 + $0xf8] sm:$0xff]
        %v302 = vld [vmem:[%s239 + $0x100] sm:$0xff]
        %v303 = vld [vmem:[%s239 + $0x108] sm:$0xff]
        %v304 = vld [vmem:[%s239 + $0x110] sm:$0xff]
        %v305 = vld [vmem:[%s239 + $0x118] sm:$0xff]
        %v306 = vld [vmem:[%s239 + $0x120] sm:$0xff]
        %v307 = vld [vmem:[%s239 + $0x128] sm:$0xff]
        %v308 = vld [vmem:[%s239 + $0x130] sm:$0xff]
        %v309 = vld [vmem:[%s239 + $0x138] sm:$0xff]
        %v310 = vld [vmem:[%s239 + $0x140] sm:$0xff]
        %v311 = vld [vmem:[%s239 + $0x148] sm:$0xff]
        %v312 = vld [vmem:[%s239 + $0x150] sm:$0xff]
        %v313 = vld [vmem:[%s239 + $0x158] sm:$0xff]
        %v314 = vld [vmem:[%s239 + $0x160] sm:$0xff]
        %v315 = vld [vmem:[%s239 + $0x168] sm:$0xff]
        %v316 = vld [vmem:[%s239 + $0x170] sm:$0xff]
        %v317 = vld [vmem:[%s239 + $0x178] sm:$0xff]
        %v318 = vld [vmem:[%s239 + $0x180] sm:$0xff]
        %v319 = vld [vmem:[%s239 + $0x188] sm:$0xff]
        %v320 = vld [vmem:[%s239 + $0x190] sm:$0xff]
        %v321 = vld [vmem:[%s239 + $0x198] sm:$0xff]
        %v322 = vld [vmem:[%s239 + $0x1a0] sm:$0xff]
        %v323 = vld [vmem:[%s239 + $0x1a8] sm:$0xff]
        %v324 = vld [vmem:[%s239 + $0x1b0] sm:$0xff]
        %v325 = vld [vmem:[%s239 + $0x1b8] sm:$0xff]
        %v326 = vld [vmem:[%s239 + $0x1c0] sm:$0xff]
        %v327 = vld [vmem:[%s239 + $0x1c8] sm:$0xff]
        %v328 = vld [vmem:[%s239 + $0x1d0] sm:$0xff]
        %v329 = vld [vmem:[%s239 + $0x1d8] sm:$0xff]
        %v330 = vld [vmem:[%s239 + $0x1e0] sm:$0xff]
        %v331 = vld [vmem:[%s239 + $0x1e8] sm:$0xff]
        %v332 = vld [vmem:[%s239 + $0x1f0] sm:$0xff]
        %v333 = vld [vmem:[%s239 + $0x1f8] sm:$0xff]
        %334 = vmatprep.subr.mxu0 0.0
        %335 = vmatpush1.msra.mxu0 %v285
        %336 = vmatprep.subr.mxu0 0.0
        %337 = vmatpush1.msra.mxu0 %v284
        %338 = vmatprep.subr.mxu0 0.0
        %339 = vmatpush1.msra.mxu0 %v283
        %340 = vmatprep.subr.mxu0 0.0
        %341 = vmatpush1.msra.mxu0 %v282
        %342 = vmatprep.subr.mxu0 0.0
        %343 = vmatpush1.msra.mxu0 %v281
        %344 = vmatprep.subr.mxu0 0.0
        %345 = vmatpush1.msra.mxu0 %v280
        %346 = vmatprep.subr.mxu0 0.0
        %347 = vmatpush1.msra.mxu0 %v279
        %348 = vmatprep.subr.mxu0 0.0
        %349 = vmatpush1.msra.mxu0 %v278
        %350 = vmatprep.subr.mxu0 0.0
        %351 = vmatpush1.msra.mxu0 %v277
        %352 = vmatprep.subr.mxu0 0.0
        %353 = vmatpush1.msra.mxu0 %v276
        %354 = vmatprep.subr.mxu0 0.0
        %355 = vmatpush1.msra.mxu0 %v275
        %356 = vmatprep.subr.mxu0 0.0
        %357 = vmatpush1.msra.mxu0 %v274
        %358 = vmatprep.subr.mxu0 0.0
        %359 = vmatpush1.msra.mxu0 %v273
        %360 = vmatprep.subr.mxu0 0.0
        %361 = vmatpush1.msra.mxu0 %v272
        %362 = vmatprep.subr.mxu0 0.0
        %363 = vmatpush1.msra.mxu0 %v271
        %364 = vmatprep.subr.mxu0 0.0
        %365 = vmatpush1.msra.mxu0 %v270
        %366 = vmatprep.subr.mxu0 0.0
        %367 = vmatpush2.msra.mxu0 %v301
        %368 = vmatprep.subr.mxu0 0.0
        %369 = vmatpush2.msra.mxu0 %v300
        %370 = vmatprep.subr.mxu0 0.0
        %371 = vmatpush2.msra.mxu0 %v299
        %372 = vmatprep.subr.mxu0 0.0
        %373 = vmatpush2.msra.mxu0 %v298
        %374 = vmatprep.subr.mxu0 0.0
        %375 = vmatpush2.msra.mxu0 %v297
        %376 = vmatprep.subr.mxu0 0.0
        %377 = vmatpush2.msra.mxu0 %v296
        %378 = vmatprep.subr.mxu0 0.0
        %379 = vmatpush2.msra.mxu0 %v295
        %380 = vmatprep.subr.mxu0 0.0
        %381 = vmatpush2.msra.mxu0 %v294
        %382 = vmatprep.subr.mxu0 0.0
        %383 = vmatpush2.msra.mxu0 %v293
        %384 = vmatprep.subr.mxu0 0.0
        %385 = vmatpush2.msra.mxu0 %v292
        %386 = vmatprep.subr.mxu0 0.0
        %387 = vmatpush2.msra.mxu0 %v291
        %388 = vmatprep.subr.mxu0 0.0
        %389 = vmatpush2.msra.mxu0 %v290
        %390 = vmatprep.subr.mxu0 0.0
        %391 = vmatpush2.msra.mxu0 %v289
        %392 = vmatprep.subr.mxu0 0.0
        %393 = vmatpush2.msra.mxu0 %v288
        %394 = vmatprep.subr.mxu0 0.0
        %395 = vmatpush2.msra.mxu0 %v287
        %396 = vmatprep.subr.mxu0 0.0
        %397 = vmatpush2.msra.mxu0 %v286
        %398 = vmatprep.mubr.f32.mxu0 %v263
        %399 = vmatmul.mubr.f32.gmra.mxu0 %v262
        %v400 = vpop.f32.mrf.mxu0
        %v401 = vadd.f32 0.0, %v400
        %v402 = vpop.f32.mrf.mxu0
        %403 = vmatprep.mubr.f32.mxu0 %v267
        %404 = vmatmul.mubr.f32.gmra.mxu0 %v266
        %v405 = vpop.f32.mrf.mxu0
        %v406 = vadd.f32 0.0, %v405
        %v407 = vpop.f32.mrf.mxu0
        %408 = vdwg.mxu0
        %409 = vmatprep.subr.mxu0 0.0
        %410 = vmatpush1.msra.mxu0 %v317
        %411 = vmatprep.subr.mxu0 0.0
        %412 = vmatpush1.msra.mxu0 %v316
        %413 = vmatprep.subr.mxu0 0.0
        %414 = vmatpush1.msra.mxu0 %v315
        %415 = vmatprep.subr.mxu0 0.0
        %416 = vmatpush1.msra.mxu0 %v314
        %417 = vmatprep.subr.mxu0 0.0
        %418 = vmatpush1.msra.mxu0 %v313
        %419 = vmatprep.subr.mxu0 0.0
        %420 = vmatpush1.msra.mxu0 %v312
        %421 = vmatprep.subr.mxu0 0.0
        %422 = vmatpush1.msra.mxu0 %v311
        %423 = vmatprep.subr.mxu0 0.0
        %424 = vmatpush1.msra.mxu0 %v310
        %425 = vmatprep.subr.mxu0 0.0
        %426 = vmatpush1.msra.mxu0 %v309
        %427 = vmatprep.subr.mxu0 0.0
        %428 = vmatpush1.msra.mxu0 %v308
        %429 = vmatprep.subr.mxu0 0.0
        %430 = vmatpush1.msra.mxu0 %v307
        %431 = vmatprep.subr.mxu0 0.0
        %432 = vmatpush1.msra.mxu0 %v306
        %433 = vmatprep.subr.mxu0 0.0
        %434 = vmatpush1.msra.mxu0 %v305
        %435 = vmatprep.subr.mxu0 0.0
        %436 = vmatpush1.msra.mxu0 %v304
        %437 = vmatprep.subr.mxu0 0.0
        %438 = vmatpush1.msra.mxu0 %v303
        %439 = vmatprep.subr.mxu0 0.0
        %440 = vmatpush1.msra.mxu0 %v302
        %441 = vmatprep.subr.mxu0 0.0
        %442 = vmatpush2.msra.mxu0 %v333
        %443 = vmatprep.subr.mxu0 0.0
        %444 = vmatpush2.msra.mxu0 %v332
        %445 = vmatprep.subr.mxu0 0.0
        %446 = vmatpush2.msra.mxu0 %v331
        %447 = vmatprep.subr.mxu0 0.0
        %448 = vmatpush2.msra.mxu0 %v330
        %449 = vmatprep.subr.mxu0 0.0
        %450 = vmatpush2.msra.mxu0 %v329
        %451 = vmatprep.subr.mxu0 0.0
        %452 = vmatpush2.msra.mxu0 %v328
        %453 = vmatprep.subr.mxu0 0.0
        %454 = vmatpush2.msra.mxu0 %v327
        %455 = vmatprep.subr.mxu0 0.0
        %456 = vmatpush2.msra.mxu0 %v326
        %457 = vmatprep.subr.mxu0 0.0
        %458 = vmatpush2.msra.mxu0 %v325
        %459 = vmatprep.subr.mxu0 0.0
        %460 = vmatpush2.msra.mxu0 %v324
        %461 = vmatprep.subr.mxu0 0.0
        %462 = vmatpush2.msra.mxu0 %v323
        %463 = vmatprep.subr.mxu0 0.0
        %464 = vmatpush2.msra.mxu0 %v322
        %465 = vmatprep.subr.mxu0 0.0
        %466 = vmatpush2.msra.mxu0 %v321
        %467 = vmatprep.subr.mxu0 0.0
        %468 = vmatpush2.msra.mxu0 %v320
        %469 = vmatprep.subr.mxu0 0.0
        %470 = vmatpush2.msra.mxu0 %v319
        %471 = vmatprep.subr.mxu0 0.0
        %472 = vmatpush2.msra.mxu0 %v318
        %473 = vmatprep.mubr.f32.mxu0 %v265
        %474 = vmatmul.mubr.f32.gmra.mxu0 %v264
        %v475 = vpop.f32.mrf.mxu0
        %v476 = vadd.f32 %v401, %v475
        %v477 = vpop.f32.mrf.mxu0
        %478 = vmatprep.mubr.f32.mxu0 %v269
        %479 = vmatmul.mubr.f32.gmra.mxu0 %v268
        %v480 = vpop.f32.mrf.mxu0
        %v481 = vadd.f32 %v406, %v480
        %v482 = vpop.f32.mrf.mxu0
        %483 = vdwg.mxu0
        %v484 = vadd.f32 %v260, %v476
        %v485 = vadd.f32 %v261, %v481
        %486 = vst [vmem:[%s245] sm:$0xff] %v484
        %487 = vst [vmem:[%s245 + $0x8] sm:$0xff] %v485
        %s488 = smul.u32 2, %s18
        %p489 = scmp.lt.s32.totalorder %s488, 1
        %s490 = scalar_select %p489, %s488, 1
        %s491 = smul.addr %s490, 8
        %s492 = scalar_lea.vmem %s3, %s491
        // Predicated region
        $region60: #{_lambda_.1} parent=50 // pred_check
          %p493 = pneg %p119
        $region61: #{_lambda_.1} parent=50 // pred_check_branch
          %495 = sbr.rel (%p493) target = $region63
        $region62: #{_lambda_.1} parent=50 // pred_region
          %s496 = smul.u32 2, %s18
        $region63: #{_lambda_.1} parent=50 // pred_fallthru
          _
        // Predicated region
        $region64: #{_lambda_.1} parent=50 // pred_check
          %p497 = pneg %p119
        $region65: #{_lambda_.1} parent=50 // pred_check_branch
          %499 = sbr.rel (%p497) target = $region67
        $region66: #{_lambda_.1} parent=50 // pred_region
          %s500 = smul.u32 2, %s18
          %p501 = scmp.lt.s32.totalorder %s500, 1
          %s502 = scalar_select %p501, %s500, 1
          %s503 = smul.addr %s502, 8
          %s504 = scalar_lea.vmem %s3, %s503
        $region67: #{_lambda_.1} parent=50 // pred_fallthru
          _
      $region51: #{_lambda_.1} parent=5 // pred_fallthru
        _
      %p505 = scmp.le.s32.totalorder 2, %s9
      // Predicated region
      $region68: #{_lambda_.1} parent=5 // pred_check
        %p506 = pneg %p505
      $region69: #{_lambda_.1} parent=5 // pred_check_branch
        %508 = sbr.rel (%p506) target = $region71
      $region70: #{_lambda_.1} parent=5 // pred_region
        %s509 = ssub.s32 %s9, 2
      $region71: #{_lambda_.1} parent=5 // pred_fallthru
        _
    $region6: #{_lambda_.1} parent=1 // loop_footer
      %s13 = sadd.s32 1, %s9
    $region7: #{_lambda_.1} parent=1 // loop_footer_branch
      %8 = sbr.rel target = $region3
    $region8: #{_lambda_.1} parent=1 // loop_exit
      _

</llo_original>
